<compile_context>
chip_gen: v6e
topology: v6e:2x2x1
jax: 0.10.0
libtpu: 0.0.40
codegen_flags: <defaults>
</compile_context>

<pallas_src>
import jax
import jax.numpy as jnp
from jax.experimental import pallas as pl
from jax.experimental.pallas import tpu as pltpu


def _blur_kernel(x_ref, o_ref, v_ref):
    # x_ref: (H, W, TN) input block   (H -> tile stack, W -> sublanes, TN -> lanes)
    # o_ref: (H, W, TN) output block
    # v_ref: (H, W+2, TN) f32 scratch; columns 1..W hold the vertical-pass
    #        result, columns 0 and W+1 hold its reflect halo.
    H, W, _ = x_ref.shape
    x = x_ref[...].astype(jnp.float32)  # one cast per block

    # ---- vertical [1, 2, 1] pass, reflect boundary (row -1 -> 1, row H -> H-2)
    if H > 2:
        v_ref[1:H - 1, 1:W + 1, :] = x[0:H - 2] + 2.0 * x[1:H - 1] + x[2:H]
    v_ref[0:1, 1:W + 1, :] = 2.0 * (x[0:1] + x[1:2])
    v_ref[H - 1:H, 1:W + 1, :] = 2.0 * (x[H - 1:H] + x[H - 2:H - 1])

    # ---- reflect halo columns (col -1 -> col 1, col W -> col W-2)
    v_ref[:, 0:1, :] = v_ref[:, 2:3, :]
    v_ref[:, W + 1:W + 2, :] = v_ref[:, W - 1:W, :]

    # ---- horizontal [1, 2, 1] pass, 1/16 scale folded in, single dense store
    s = 1.0 / 16.0
    o_ref[...] = ((v_ref[:, 0:W, :]
                   + 2.0 * v_ref[:, 1:W + 1, :]
                   + v_ref[:, 2:W + 2, :]) * s).astype(o_ref.dtype)


def _pick_tn(n, h, w, in_bytes, out_bytes, budget_bytes=16 * 1024 * 1024):
    """Channels (lanes) per block: whole axis if small, else lane-aligned tiles."""
    # Rough per-lane VMEM: double-buffered input + output blocks, haloed f32
    # scratch, plus ~2 f32 temporaries in flight. Stays under the 32 MiB scoped
    # limit we request below on all of v5e / v6e / v7x.
    per_lane = h * (w * (2 * in_bytes + 2 * out_bytes + 2 * 4) + (w + 2) * 4)
    max_tn = max(1, budget_bytes // per_lane)
    if n <= max_tn and n <= 256:
        return n                                  # tiny problem: single block
    tn = min(max_tn, max(n // 2, 128))            # >=2 blocks lets megacore split
    tn = (tn // 128) * 128                        # lane-aligned channel tiles
    if tn == 0:
        # TODO(synk): very large H*W with few lanes per block would additionally
        # need spatial (H) tiling with halo handling; not needed for
        # StyleGAN-size feature maps.
        tn = 128
    return min(tn, n)


def blur(x):
    """Equivalent of Blur().forward(x) for NCHW input x."""
    B, C, H, W = x.shape
    assert H >= 2 and W >= 2, "reflect padding requires H >= 2 and W >= 2"
    N = B * C

    # channels-on-lanes layout: (H, W, B*C)
    xt = jnp.transpose(x, (2, 3, 0, 1)).reshape(H, W, N)

    in_bytes = jnp.dtype(x.dtype).itemsize
    tn = _pick_tn(N, H, W, in_bytes, in_bytes)
    grid = (pl.cdiv(N, tn),)

    out = pl.pallas_call(
        _blur_kernel,
        out_shape=jax.ShapeDtypeStruct((H, W, N), x.dtype),
        grid=grid,
        in_specs=[pl.BlockSpec((H, W, tn), lambda n: (0, 0, n))],
        out_specs=pl.BlockSpec((H, W, tn), lambda n: (0, 0, n)),
        scratch_shapes=[pltpu.VMEM((H, W + 2, tn), jnp.float32)],
        compiler_params=pltpu.CompilerParams(
            dimension_semantics=("parallel",),
            vmem_limit_bytes=32 * 1024 * 1024,
        ),
        cost_estimate=pl.CostEstimate(
            flops=7 * N * H * W,
            transcendentals=0,
            bytes_accessed=2 * N * H * W * in_bytes,
        ),
    )(xt)

    return jnp.transpose(out.reshape(H, W, B, C), (2, 3, 0, 1))


if __name__ == "__main__":
    key = jax.random.PRNGKey(0)
    B, C, H, W = 2, 4, 16, 16
    x = jax.random.normal(key, (B, C, H, W), dtype=jnp.float32)

    y = blur(x)
    y = jax.block_until_ready(y)

    # Pure-JAX reference: same math as kornia filter2d([1,2,1]^T[1,2,1]/16,
    # border_type='reflect', normalized=True), done the non-separable way.
    f = jnp.array([1.0, 2.0, 1.0], dtype=jnp.float32)
    k2d = f[None, :] * f[:, None]
    k2d = k2d / jnp.sum(jnp.abs(k2d))
    xp = jnp.pad(x, ((0, 0), (0, 0), (1, 1), (1, 1)), mode="reflect")
    ref = jnp.zeros_like(x)
    for i in range(3):
        for j in range(3):
            ref = ref + k2d[i, j] * xp[:, :, i:i + H, j:j + W]

    assert y.shape == (B, C, H, W)
    assert jnp.max(jnp.abs(y - ref)) < 1e-5

    print("KERNEL_OK")
</pallas_src>

<mosaic_0001>
module attributes {stable_mosaic.version = 11 : i64} {
  func.func @_blur_kernel(%arg0: i32, %arg1: memref<16x16x8xf32, #tpu.memory_space<vmem>>, %arg2: memref<16x16x8xf32, #tpu.memory_space<vmem>>, %arg3: memref<16x18x8xf32, #tpu.memory_space<vmem>>) attributes {dimension_semantics = [#tpu.dimension_semantics<parallel>], iteration_bounds = array<i64: 1>, scalar_prefetch = 0 : i64, scratch_operands = 1 : i64, tpu.core_type = #tpu.core_type<tc>, window_params = [{transform_indices = @transform_0, window_bounds = array<i64: 16, 16, 8>}, {transform_indices = @transform_1, window_bounds = array<i64: 16, 16, 8>}]} {
    %c0 = arith.constant 0 : index
    %c0_0 = arith.constant 0 : index
    %c0_1 = arith.constant 0 : index
    %0 = vector.load %arg1[%c0, %c0_0, %c0_1] : memref<16x16x8xf32, #tpu.memory_space<vmem>>, vector<16x16x8xf32>
    %1 = vector.extract_strided_slice %0 {offsets = [0, 0, 0], sizes = [14, 16, 8], strides = [1, 1, 1]} : vector<16x16x8xf32> to vector<14x16x8xf32>
    %2 = vector.extract_strided_slice %0 {offsets = [1, 0, 0], sizes = [14, 16, 8], strides = [1, 1, 1]} : vector<16x16x8xf32> to vector<14x16x8xf32>
    %cst = arith.constant 2.000000e+00 : f32
    %3 = vector.broadcast %cst : f32 to vector<14x16x8xf32>
    %4 = arith.mulf %3, %2 : vector<14x16x8xf32>
    %5 = arith.addf %1, %4 : vector<14x16x8xf32>
    %6 = vector.extract_strided_slice %0 {offsets = [2, 0, 0], sizes = [14, 16, 8], strides = [1, 1, 1]} : vector<16x16x8xf32> to vector<14x16x8xf32>
    %7 = arith.addf %5, %6 : vector<14x16x8xf32>
    %c1 = arith.constant 1 : index
    %c1_2 = arith.constant 1 : index
    %c0_3 = arith.constant 0 : index
    %8 = vector.load %arg3[%c1, %c1_2, %c0_3] : memref<16x18x8xf32, #tpu.memory_space<vmem>>, vector<14x16x8xf32>
    tpu.vector_store %arg3[%c1, %c1_2, %c0_3], %7 {strides = array<i32>} : memref<16x18x8xf32, #tpu.memory_space<vmem>>, vector<14x16x8xf32>,
    %9 = vector.extract_strided_slice %0 {offsets = [0, 0, 0], sizes = [1, 16, 8], strides = [1, 1, 1]} : vector<16x16x8xf32> to vector<1x16x8xf32>
    %10 = vector.extract_strided_slice %0 {offsets = [1, 0, 0], sizes = [1, 16, 8], strides = [1, 1, 1]} : vector<16x16x8xf32> to vector<1x16x8xf32>
    %11 = arith.addf %9, %10 : vector<1x16x8xf32>
    %cst_4 = arith.constant 2.000000e+00 : f32
    %12 = vector.broadcast %cst_4 : f32 to vector<1x16x8xf32>
    %13 = arith.mulf %12, %11 : vector<1x16x8xf32>
    %c0_5 = arith.constant 0 : index
    %c1_6 = arith.constant 1 : index
    %c0_7 = arith.constant 0 : index
    %14 = vector.load %arg3[%c0_5, %c1_6, %c0_7] : memref<16x18x8xf32, #tpu.memory_space<vmem>>, vector<1x16x8xf32>
    tpu.vector_store %arg3[%c0_5, %c1_6, %c0_7], %13 {strides = array<i32>} : memref<16x18x8xf32, #tpu.memory_space<vmem>>, vector<1x16x8xf32>,
    %15 = vector.extract_strided_slice %0 {offsets = [15, 0, 0], sizes = [1, 16, 8], strides = [1, 1, 1]} : vector<16x16x8xf32> to vector<1x16x8xf32>
    %16 = vector.extract_strided_slice %0 {offsets = [14, 0, 0], sizes = [1, 16, 8], strides = [1, 1, 1]} : vector<16x16x8xf32> to vector<1x16x8xf32>
    %17 = arith.addf %15, %16 : vector<1x16x8xf32>
    %cst_8 = arith.constant 2.000000e+00 : f32
    %18 = vector.broadcast %cst_8 : f32 to vector<1x16x8xf32>
    %19 = arith.mulf %18, %17 : vector<1x16x8xf32>
    %c15 = arith.constant 15 : index
    %c1_9 = arith.constant 1 : index
    %c0_10 = arith.constant 0 : index
    %20 = vector.load %arg3[%c15, %c1_9, %c0_10] : memref<16x18x8xf32, #tpu.memory_space<vmem>>, vector<1x16x8xf32>
    tpu.vector_store %arg3[%c15, %c1_9, %c0_10], %19 {strides = array<i32>} : memref<16x18x8xf32, #tpu.memory_space<vmem>>, vector<1x16x8xf32>,
    %c0_11 = arith.constant 0 : index
    %c2 = arith.constant 2 : index
    %c0_12 = arith.constant 0 : index
    %21 = vector.load %arg3[%c0_11, %c2, %c0_12] : memref<16x18x8xf32, #tpu.memory_space<vmem>>, vector<16x1x8xf32>
    %c0_13 = arith.constant 0 : index
    %c0_14 = arith.constant 0 : index
    %c0_15 = arith.constant 0 : index
    %22 = vector.load %arg3[%c0_13, %c0_14, %c0_15] : memref<16x18x8xf32, #tpu.memory_space<vmem>>, vector<16x1x8xf32>
    tpu.vector_store %arg3[%c0_13, %c0_14, %c0_15], %21 {strides = array<i32>} : memref<16x18x8xf32, #tpu.memory_space<vmem>>, vector<16x1x8xf32>,
    %c0_16 = arith.constant 0 : index
    %c15_17 = arith.constant 15 : index
    %c0_18 = arith.constant 0 : index
    %23 = vector.load %arg3[%c0_16, %c15_17, %c0_18] : memref<16x18x8xf32, #tpu.memory_space<vmem>>, vector<16x1x8xf32>
    %c0_19 = arith.constant 0 : index
    %c17 = arith.constant 17 : index
    %c0_20 = arith.constant 0 : index
    %24 = vector.load %arg3[%c0_19, %c17, %c0_20] : memref<16x18x8xf32, #tpu.memory_space<vmem>>, vector<16x1x8xf32>
    tpu.vector_store %arg3[%c0_19, %c17, %c0_20], %23 {strides = array<i32>} : memref<16x18x8xf32, #tpu.memory_space<vmem>>, vector<16x1x8xf32>,
    %c0_21 = arith.constant 0 : index
    %c0_22 = arith.constant 0 : index
    %c0_23 = arith.constant 0 : index
    %25 = vector.load %arg3[%c0_21, %c0_22, %c0_23] : memref<16x18x8xf32, #tpu.memory_space<vmem>>, vector<16x16x8xf32>
    %c0_24 = arith.constant 0 : index
    %c1_25 = arith.constant 1 : index
    %c0_26 = arith.constant 0 : index
    %26 = vector.load %arg3[%c0_24, %c1_25, %c0_26] : memref<16x18x8xf32, #tpu.memory_space<vmem>>, vector<16x16x8xf32>
    %cst_27 = arith.constant 2.000000e+00 : f32
    %27 = vector.broadcast %cst_27 : f32 to vector<16x16x8xf32>
    %28 = arith.mulf %27, %26 : vector<16x16x8xf32>
    %29 = arith.addf %25, %28 : vector<16x16x8xf32>
    %c0_28 = arith.constant 0 : index
    %c2_29 = arith.constant 2 : index
    %c0_30 = arith.constant 0 : index
    %30 = vector.load %arg3[%c0_28, %c2_29, %c0_30] : memref<16x18x8xf32, #tpu.memory_space<vmem>>, vector<16x16x8xf32>
    %31 = arith.addf %29, %30 : vector<16x16x8xf32>
    %cst_31 = arith.constant 6.250000e-02 : f32
    %32 = vector.broadcast %cst_31 : f32 to vector<16x16x8xf32>
    %33 = arith.mulf %31, %32 : vector<16x16x8xf32>
    %c0_32 = arith.constant 0 : index
    %c0_33 = arith.constant 0 : index
    %c0_34 = arith.constant 0 : index
    %34 = vector.load %arg2[%c0_32, %c0_33, %c0_34] : memref<16x16x8xf32, #tpu.memory_space<vmem>>, vector<16x16x8xf32>
    tpu.vector_store %arg2[%c0_32, %c0_33, %c0_34], %33 {strides = array<i32>} : memref<16x16x8xf32, #tpu.memory_space<vmem>>, vector<16x16x8xf32>,
    return
  }
  func.func @transform_0(%arg0: i32) -> (i32, i32, i32) {
    %c0_i32 = arith.constant 0 : i32
    %c0_i32_0 = arith.constant 0 : i32
    %c0_i32_1 = arith.constant 0 : i32
    return %c0_i32, %c0_i32_0, %arg0 : i32, i32, i32
  }
  func.func @transform_1(%arg0: i32) -> (i32, i32, i32) {
    %c0_i32 = arith.constant 0 : i32
    %c0_i32_0 = arith.constant 0 : i32
    %c0_i32_1 = arith.constant 0 : i32
    return %c0_i32, %c0_i32_0, %arg0 : i32, i32, i32
  }
}

</mosaic_0001>

<llo_original>
// kernel: tpu_custom_call.1
$region0: #{tpu_custom_call.1}
  #allocation0 [shape = 'u32[]', space=smem, size = 0x4, offset = 0x4, fixed_abs, tag = 'smem constant byte address 0x4 - core index']
  #allocation1 [shape = 'u32[144,128]{1,0:T(1,128)}', space=vmem, size = 0x12000, scoped, tag = 'internal scratch']
  #allocation2 [shape = 'f32[16,18,8]{2,1,0:T(8,128)}', space=vmem, size = 0x30000, scoped, tag = 'scratch operand']
  %s0 = inlined_call_operand.vmem [shape: f32[16,16,8], index: 0, kind: input, shape index: {}]
  %s1 = inlined_call_operand.vmem [shape: f32[16,16,8], index: 1, kind: output, shape index: {}]
  %s2 = sld [smem:[#allocation0]]
  $region14: #{tpu_custom_call.1} parent=0
    _
  %s4 = ssub.s32 1, %s2
  %s5 = scalar_select 0, %s4, %s2
  // Predicated region
  $region2: #{tpu_custom_call.1} parent=0 // pred_check
    _
  $region3: #{tpu_custom_call.1} parent=0 // pred_check_branch
    %7 = sbr.rel (0) target = $region5
  $region4: #{tpu_custom_call.1} parent=0 // pred_region
    _
  $region5: #{tpu_custom_call.1} parent=0 // pred_fallthru
    _
  %v8 = vld [vmem:[%s0] sm:$0xff]
  %v9 = vld [vmem:[%s0 + $0x8] sm:$0xff]
  %v10 = vld [vmem:[%s0 + $0x10] sm:$0xff]
  %v11 = vld [vmem:[%s0 + $0x18] sm:$0xff]
  %v12 = vld [vmem:[%s0 + $0x20] sm:$0xff]
  %v13 = vld [vmem:[%s0 + $0x28] sm:$0xff]
  %v14 = vld [vmem:[%s0 + $0x30] sm:$0xff]
  %v15 = vld [vmem:[%s0 + $0x38] sm:$0xff]
  %v16 = vld [vmem:[%s0 + $0x40] sm:$0xff]
  %v17 = vld [vmem:[%s0 + $0x48] sm:$0xff]
  %v18 = vld [vmem:[%s0 + $0x50] sm:$0xff]
  %v19 = vld [vmem:[%s0 + $0x58] sm:$0xff]
  %v20 = vld [vmem:[%s0 + $0x60] sm:$0xff]
  %v21 = vld [vmem:[%s0 + $0x68] sm:$0xff]
  %v22 = vld [vmem:[%s0 + $0x70] sm:$0xff]
  %v23 = vld [vmem:[%s0 + $0x78] sm:$0xff]
  %v24 = vld [vmem:[%s0 + $0x80] sm:$0xff]
  %v25 = vld [vmem:[%s0 + $0x88] sm:$0xff]
  %v26 = vld [vmem:[%s0 + $0x90] sm:$0xff]
  %v27 = vld [vmem:[%s0 + $0x98] sm:$0xff]
  %v28 = vld [vmem:[%s0 + $0xa0] sm:$0xff]
  %v29 = vld [vmem:[%s0 + $0xa8] sm:$0xff]
  %v30 = vld [vmem:[%s0 + $0xb0] sm:$0xff]
  %v31 = vld [vmem:[%s0 + $0xb8] sm:$0xff]
  %v32 = vld [vmem:[%s0 + $0xc0] sm:$0xff]
  %v33 = vld [vmem:[%s0 + $0xc8] sm:$0xff]
  %v34 = vld [vmem:[%s0 + $0xd0] sm:$0xff]
  %v35 = vld [vmem:[%s0 + $0xd8] sm:$0xff]
  %v36 = vld [vmem:[%s0 + $0xe0] sm:$0xff]
  %v37 = vld [vmem:[%s0 + $0xe8] sm:$0xff]
  %v38 = vld [vmem:[%s0 + $0xf0] sm:$0xff]
  %v39 = vld [vmem:[%s0 + $0xf8] sm:$0xff]
  %v40 = vmul.f32 %v10, 2.0
  %v41 = vmul.f32 %v11, 2.0
  %v42 = vmul.f32 %v12, 2.0
  %v43 = vmul.f32 %v13, 2.0
  %v44 = vmul.f32 %v14, 2.0
  %v45 = vmul.f32 %v15, 2.0
  %v46 = vmul.f32 %v16, 2.0
  %v47 = vmul.f32 %v17, 2.0
  %v48 = vmul.f32 %v18, 2.0
  %v49 = vmul.f32 %v19, 2.0
  %v50 = vmul.f32 %v20, 2.0
  %v51 = vmul.f32 %v21, 2.0
  %v52 = vmul.f32 %v22, 2.0
  %v53 = vmul.f32 %v23, 2.0
  %v54 = vmul.f32 %v24, 2.0
  %v55 = vmul.f32 %v25, 2.0
  %v56 = vmul.f32 %v26, 2.0
  %v57 = vmul.f32 %v27, 2.0
  %v58 = vmul.f32 %v28, 2.0
  %v59 = vmul.f32 %v29, 2.0
  %v60 = vmul.f32 %v30, 2.0
  %v61 = vmul.f32 %v31, 2.0
  %v62 = vmul.f32 %v32, 2.0
  %v63 = vmul.f32 %v33, 2.0
  %v64 = vmul.f32 %v34, 2.0
  %v65 = vmul.f32 %v35, 2.0
  %v66 = vmul.f32 %v36, 2.0
  %v67 = vmul.f32 %v37, 2.0
  %v68 = vadd.f32 %v8, %v40
  %v69 = vadd.f32 %v9, %v41
  %v70 = vadd.f32 %v10, %v42
  %v71 = vadd.f32 %v11, %v43
  %v72 = vadd.f32 %v12, %v44
  %v73 = vadd.f32 %v13, %v45
  %v74 = vadd.f32 %v14, %v46
  %v75 = vadd.f32 %v15, %v47
  %v76 = vadd.f32 %v16, %v48
  %v77 = vadd.f32 %v17, %v49
  %v78 = vadd.f32 %v18, %v50
  %v79 = vadd.f32 %v19, %v51
  %v80 = vadd.f32 %v20, %v52
  %v81 = vadd.f32 %v21, %v53
  %v82 = vadd.f32 %v22, %v54
  %v83 = vadd.f32 %v23, %v55
  %v84 = vadd.f32 %v24, %v56
  %v85 = vadd.f32 %v25, %v57
  %v86 = vadd.f32 %v26, %v58
  %v87 = vadd.f32 %v27, %v59
  %v88 = vadd.f32 %v28, %v60
  %v89 = vadd.f32 %v29, %v61
  %v90 = vadd.f32 %v30, %v62
  %v91 = vadd.f32 %v31, %v63
  %v92 = vadd.f32 %v32, %v64
  %v93 = vadd.f32 %v33, %v65
  %v94 = vadd.f32 %v34, %v66
  %v95 = vadd.f32 %v35, %v67
  %v96 = vadd.f32 %v68, %v12
  %v97 = vadd.f32 %v69, %v13
  %v98 = vadd.f32 %v70, %v14
  %v99 = vadd.f32 %v71, %v15
  %v100 = vadd.f32 %v72, %v16
  %v101 = vadd.f32 %v73, %v17
  %v102 = vadd.f32 %v74, %v18
  %v103 = vadd.f32 %v75, %v19
  %v104 = vadd.f32 %v76, %v20
  %v105 = vadd.f32 %v77, %v21
  %v106 = vadd.f32 %v78, %v22
  %v107 = vadd.f32 %v79, %v23
  %v108 = vadd.f32 %v80, %v24
  %v109 = vadd.f32 %v81, %v25
  %v110 = vadd.f32 %v82, %v26
  %v111 = vadd.f32 %v83, %v27
  %v112 = vadd.f32 %v84, %v28
  %v113 = vadd.f32 %v85, %v29
  %v114 = vadd.f32 %v86, %v30
  %v115 = vadd.f32 %v87, %v31
  %v116 = vadd.f32 %v88, %v32
  %v117 = vadd.f32 %v89, %v33
  %v118 = vadd.f32 %v90, %v34
  %v119 = vadd.f32 %v91, %v35
  %v120 = vadd.f32 %v92, %v36
  %v121 = vadd.f32 %v93, %v37
  %v122 = vadd.f32 %v94, %v38
  %v123 = vadd.f32 %v95, %v39
  %s124 = scalar_lea.vmem [#allocation2], 24
  %vm125 = vcmask 64512
  %126 = vst.msk [vmem:[%s124 + $0x1] sm:$0xff] %vm125, %v96
  %127 = vst.msk [vmem:[%s124 + $0x9] sm:$0xff] %vm125, %v97
  %128 = vst.msk [vmem:[%s124 + $0x19] sm:$0xff] %vm125, %v98
  %129 = vst.msk [vmem:[%s124 + $0x21] sm:$0xff] %vm125, %v99
  %130 = vst.msk [vmem:[%s124 + $0x31] sm:$0xff] %vm125, %v100
  %131 = vst.msk [vmem:[%s124 + $0x39] sm:$0xff] %vm125, %v101
  %132 = vst.msk [vmem:[%s124 + $0x49] sm:$0xff] %vm125, %v102
  %133 = vst.msk [vmem:[%s124 + $0x51] sm:$0xff] %vm125, %v103
  %134 = vst.msk [vmem:[%s124 + $0x61] sm:$0xff] %vm125, %v104
  %135 = vst.msk [vmem:[%s124 + $0x69] sm:$0xff] %vm125, %v105
  %136 = vst.msk [vmem:[%s124 + $0x79] sm:$0xff] %vm125, %v106
  %137 = vst.msk [vmem:[%s124 + $0x81] sm:$0xff] %vm125, %v107
  %138 = vst.msk [vmem:[%s124 + $0x91] sm:$0xff] %vm125, %v108
  %139 = vst.msk [vmem:[%s124 + $0x99] sm:$0xff] %vm125, %v109
  %140 = vst.msk [vmem:[%s124 + $0xa9] sm:$0xff] %vm125, %v110
  %141 = vst.msk [vmem:[%s124 + $0xb1] sm:$0xff] %vm125, %v111
  %142 = vst.msk [vmem:[%s124 + $0xc1] sm:$0xff] %vm125, %v112
  %143 = vst.msk [vmem:[%s124 + $0xc9] sm:$0xff] %vm125, %v113
  %144 = vst.msk [vmem:[%s124 + $0xd9] sm:$0xff] %vm125, %v114
  %145 = vst.msk [vmem:[%s124 + $0xe1] sm:$0xff] %vm125, %v115
  %146 = vst.msk [vmem:[%s124 + $0xf1] sm:$0xff] %vm125, %v116
  %147 = vst.msk [vmem:[%s124 + $0xf9] sm:$0xff] %vm125, %v117
  %148 = vst.msk [vmem:[%s124 + $0x109] sm:$0xff] %vm125, %v118
  %149 = vst.msk [vmem:[%s124 + $0x111] sm:$0xff] %vm125, %v119
  %150 = vst.msk [vmem:[%s124 + $0x121] sm:$0xff] %vm125, %v120
  %151 = vst.msk [vmem:[%s124 + $0x129] sm:$0xff] %vm125, %v121
  %152 = vst.msk [vmem:[%s124 + $0x139] sm:$0xff] %vm125, %v122
  %153 = vst.msk [vmem:[%s124 + $0x141] sm:$0xff] %vm125, %v123
  %v154 = vadd.f32 %v8, %v10
  %v155 = vadd.f32 %v9, %v11
  %v156 = vmul.f32 %v154, 2.0
  %v157 = vmul.f32 %v155, 2.0
  %158 = vst.msk [vmem:[#allocation2 + $0x1] sm:$0xff] %vm125, %v156
  %159 = vst.msk [vmem:[#allocation2 + $0x9] sm:$0xff] %vm125, %v157
  %v160 = vadd.f32 %v38, %v36
  %v161 = vadd.f32 %v39, %v37
  %v162 = vmul.f32 %v160, 2.0
  %v163 = vmul.f32 %v161, 2.0
  %s164 = scalar_lea.vmem [#allocation2], 360
  %165 = vst.msk [vmem:[%s164 + $0x1] sm:$0xff] %vm125, %v162
  %166 = vst.msk [vmem:[%s164 + $0x9] sm:$0xff] %vm125, %v163
  %v167 = vld [vmem:[#allocation2 + $0x2] sm:$0x1]
  %v168 = vld [vmem:[#allocation2 + $0x1a] sm:$0x1]
  %v169 = vld [vmem:[#allocation2 + $0x32] sm:$0x1]
  %v170 = vld [vmem:[#allocation2 + $0x4a] sm:$0x1]
  %v171 = vld [vmem:[#allocation2 + $0x62] sm:$0x1]
  %v172 = vld [vmem:[#allocation2 + $0x7a] sm:$0x1]
  %v173 = vld [vmem:[#allocation2 + $0x92] sm:$0x1]
  %v174 = vld [vmem:[#allocation2 + $0xaa] sm:$0x1]
  %v175 = vld [vmem:[#allocation2 + $0xc2] sm:$0x1]
  %v176 = vld [vmem:[#allocation2 + $0xda] sm:$0x1]
  %v177 = vld [vmem:[#allocation2 + $0xf2] sm:$0x1]
  %v178 = vld [vmem:[#allocation2 + $0x10a] sm:$0x1]
  %v179 = vld [vmem:[#allocation2 + $0x122] sm:$0x1]
  %v180 = vld [vmem:[#allocation2 + $0x13a] sm:$0x1]
  %v181 = vld [vmem:[#allocation2 + $0x152] sm:$0x1]
  %v182 = vld [vmem:[#allocation2 + $0x16a] sm:$0x1]
  %vm183 = vcmask 57344
  %184 = vst.msk [vmem:[#allocation2] sm:$0x1] %vm183, %v167
  %185 = vst.msk [vmem:[#allocation2 + $0x18] sm:$0x1] %vm183, %v168
  %186 = vst.msk [vmem:[#allocation2 + $0x30] sm:$0x1] %vm183, %v169
  %187 = vst.msk [vmem:[#allocation2 + $0x48] sm:$0x1] %vm183, %v170
  %188 = vst.msk [vmem:[#allocation2 + $0x60] sm:$0x1] %vm183, %v171
  %189 = vst.msk [vmem:[#allocation2 + $0x78] sm:$0x1] %vm183, %v172
  %190 = vst.msk [vmem:[#allocation2 + $0x90] sm:$0x1] %vm183, %v173
  %191 = vst.msk [vmem:[#allocation2 + $0xa8] sm:$0x1] %vm183, %v174
  %192 = vst.msk [vmem:[#allocation2 + $0xc0] sm:$0x1] %vm183, %v175
  %193 = vst.msk [vmem:[#allocation2 + $0xd8] sm:$0x1] %vm183, %v176
  %194 = vst.msk [vmem:[#allocation2 + $0xf0] sm:$0x1] %vm183, %v177
  %195 = vst.msk [vmem:[#allocation2 + $0x108] sm:$0x1] %vm183, %v178
  %196 = vst.msk [vmem:[#allocation2 + $0x120] sm:$0x1] %vm183, %v179
  %197 = vst.msk [vmem:[#allocation2 + $0x138] sm:$0x1] %vm183, %v180
  %198 = vst.msk [vmem:[#allocation2 + $0x150] sm:$0x1] %vm183, %v181
  %199 = vst.msk [vmem:[#allocation2 + $0x168] sm:$0x1] %vm183, %v182
  %v200 = vld [vmem:[#allocation2 + $0xf] sm:$0x1]
  %v201 = vld [vmem:[#allocation2 + $0x27] sm:$0x1]
  %v202 = vld [vmem:[#allocation2 + $0x3f] sm:$0x1]
  %v203 = vld [vmem:[#allocation2 + $0x57] sm:$0x1]
  %v204 = vld [vmem:[#allocation2 + $0x6f] sm:$0x1]
  %v205 = vld [vmem:[#allocation2 + $0x87] sm:$0x1]
  %v206 = vld [vmem:[#allocation2 + $0x9f] sm:$0x1]
  %v207 = vld [vmem:[#allocation2 + $0xb7] sm:$0x1]
  %v208 = vld [vmem:[#allocation2 + $0xcf] sm:$0x1]
  %v209 = vld [vmem:[#allocation2 + $0xe7] sm:$0x1]
  %v210 = vld [vmem:[#allocation2 + $0xff] sm:$0x1]
  %v211 = vld [vmem:[#allocation2 + $0x117] sm:$0x1]
  %v212 = vld [vmem:[#allocation2 + $0x12f] sm:$0x1]
  %v213 = vld [vmem:[#allocation2 + $0x147] sm:$0x1]
  %v214 = vld [vmem:[#allocation2 + $0x15f] sm:$0x1]
  %v215 = vld [vmem:[#allocation2 + $0x177] sm:$0x1]
  %216 = vst.msk [vmem:[#allocation2 + $0x11] sm:$0x1] %vm183, %v200
  %217 = vst.msk [vmem:[#allocation2 + $0x29] sm:$0x1] %vm183, %v201
  %218 = vst.msk [vmem:[#allocation2 + $0x41] sm:$0x1] %vm183, %v202
  %219 = vst.msk [vmem:[#allocation2 + $0x59] sm:$0x1] %vm183, %v203
  %220 = vst.msk [vmem:[#allocation2 + $0x71] sm:$0x1] %vm183, %v204
  %221 = vst.msk [vmem:[#allocation2 + $0x89] sm:$0x1] %vm183, %v205
  %222 = vst.msk [vmem:[#allocation2 + $0xa1] sm:$0x1] %vm183, %v206
  %223 = vst.msk [vmem:[#allocation2 + $0xb9] sm:$0x1] %vm183, %v207
  %224 = vst.msk [vmem:[#allocation2 + $0xd1] sm:$0x1] %vm183, %v208
  %225 = vst.msk [vmem:[#allocation2 + $0xe9] sm:$0x1] %vm183, %v209
  %226 = vst.msk [vmem:[#allocation2 + $0x101] sm:$0x1] %vm183, %v210
  %227 = vst.msk [vmem:[#allocation2 + $0x119] sm:$0x1] %vm183, %v211
  %228 = vst.msk [vmem:[#allocation2 + $0x131] sm:$0x1] %vm183, %v212
  %229 = vst.msk [vmem:[#allocation2 + $0x149] sm:$0x1] %vm183, %v213
  %230 = vst.msk [vmem:[#allocation2 + $0x161] sm:$0x1] %vm183, %v214
  %231 = vst.msk [vmem:[#allocation2 + $0x179] sm:$0x1] %vm183, %v215
  %v232 = vld [vmem:[#allocation2] sm:$0xff]
  %v233 = vld [vmem:[#allocation2 + $0x8] sm:$0xff]
  %v234 = vld [vmem:[#allocation2 + $0x18] sm:$0xff]
  %v235 = vld [vmem:[#allocation2 + $0x20] sm:$0xff]
  %v236 = vld [vmem:[#allocation2 + $0x30] sm:$0xff]
  %v237 = vld [vmem:[#allocation2 + $0x38] sm:$0xff]
  %v238 = vld [vmem:[#allocation2 + $0x48] sm:$0xff]
  %v239 = vld [vmem:[#allocation2 + $0x50] sm:$0xff]
  %v240 = vld [vmem:[#allocation2 + $0x60] sm:$0xff]
  %v241 = vld [vmem:[#allocation2 + $0x68] sm:$0xff]
  %v242 = vld [vmem:[#allocation2 + $0x78] sm:$0xff]
  %v243 = vld [vmem:[#allocation2 + $0x80] sm:$0xff]
  %v244 = vld [vmem:[#allocation2 + $0x90] sm:$0xff]
  %v245 = vld [vmem:[#allocation2 + $0x98] sm:$0xff]
  %v246 = vld [vmem:[#allocation2 + $0xa8] sm:$0xff]
  %v247 = vld [vmem:[#allocation2 + $0xb0] sm:$0xff]
  %v248 = vld [vmem:[#allocation2 + $0xc0] sm:$0xff]
  %v249 = vld [vmem:[#allocation2 + $0xc8] sm:$0xff]
  %v250 = vld [vmem:[#allocation2 + $0xd8] sm:$0xff]
  %v251 = vld [vmem:[#allocation2 + $0xe0] sm:$0xff]
  %v252 = vld [vmem:[#allocation2 + $0xf0] sm:$0xff]
  %v253 = vld [vmem:[#allocation2 + $0xf8] sm:$0xff]
  %v254 = vld [vmem:[#allocation2 + $0x108] sm:$0xff]
  %v255 = vld [vmem:[#allocation2 + $0x110] sm:$0xff]
  %v256 = vld [vmem:[#allocation2 + $0x120] sm:$0xff]
  %v257 = vld [vmem:[#allocation2 + $0x128] sm:$0xff]
  %v258 = vld [vmem:[#allocation2 + $0x138] sm:$0xff]
  %v259 = vld [vmem:[#allocation2 + $0x140] sm:$0xff]
  %v260 = vld [vmem:[#allocation2 + $0x150] sm:$0xff]
  %v261 = vld [vmem:[#allocation2 + $0x158] sm:$0xff]
  %v262 = vld [vmem:[#allocation2 + $0x168] sm:$0xff]
  %v263 = vld [vmem:[#allocation2 + $0x170] sm:$0xff]
  %v264 = vld [vmem:[#allocation2 + $0x1] sm:$0xff]
  %v265 = vld [vmem:[#allocation2 + $0x9] sm:$0xff]
  %v266 = vld [vmem:[#allocation2 + $0x19] sm:$0xff]
  %v267 = vld [vmem:[#allocation2 + $0x21] sm:$0xff]
  %v268 = vld [vmem:[#allocation2 + $0x31] sm:$0xff]
  %v269 = vld [vmem:[#allocation2 + $0x39] sm:$0xff]
  %v270 = vld [vmem:[#allocation2 + $0x49] sm:$0xff]
  %v271 = vld [vmem:[#allocation2 + $0x51] sm:$0xff]
  %v272 = vld [vmem:[#allocation2 + $0x61] sm:$0xff]
  %v273 = vld [vmem:[#allocation2 + $0x69] sm:$0xff]
  %v274 = vld [vmem:[#allocation2 + $0x79] sm:$0xff]
  %v275 = vld [vmem:[#allocation2 + $0x81] sm:$0xff]
  %v276 = vld [vmem:[#allocation2 + $0x91] sm:$0xff]
  %v277 = vld [vmem:[#allocation2 + $0x99] sm:$0xff]
  %v278 = vld [vmem:[#allocation2 + $0xa9] sm:$0xff]
  %v279 = vld [vmem:[#allocation2 + $0xb1] sm:$0xff]
  %v280 = vld [vmem:[#allocation2 + $0xc1] sm:$0xff]
  %v281 = vld [vmem:[#allocation2 + $0xc9] sm:$0xff]
  %v282 = vld [vmem:[#allocation2 + $0xd9] sm:$0xff]
  %v283 = vld [vmem:[#allocation2 + $0xe1] sm:$0xff]
  %v284 = vld [vmem:[#allocation2 + $0xf1] sm:$0xff]
  %v285 = vld [vmem:[#allocation2 + $0xf9] sm:$0xff]
  %v286 = vld [vmem:[#allocation2 + $0x109] sm:$0xff]
  %v287 = vld [vmem:[#allocation2 + $0x111] sm:$0xff]
  %v288 = vld [vmem:[#allocation2 + $0x121] sm:$0xff]
  %v289 = vld [vmem:[#allocation2 + $0x129] sm:$0xff]
  %v290 = vld [vmem:[#allocation2 + $0x139] sm:$0xff]
  %v291 = vld [vmem:[#allocation2 + $0x141] sm:$0xff]
  %v292 = vld [vmem:[#allocation2 + $0x151] sm:$0xff]
  %v293 = vld [vmem:[#allocation2 + $0x159] sm:$0xff]
  %v294 = vld [vmem:[#allocation2 + $0x169] sm:$0xff]
  %v295 = vld [vmem:[#allocation2 + $0x171] sm:$0xff]
  %v296 = vmul.f32 %v264, 2.0
  %v297 = vmul.f32 %v265, 2.0
  %v298 = vmul.f32 %v266, 2.0
  %v299 = vmul.f32 %v267, 2.0
  %v300 = vmul.f32 %v268, 2.0
  %v301 = vmul.f32 %v269, 2.0
  %v302 = vmul.f32 %v270, 2.0
  %v303 = vmul.f32 %v271, 2.0
  %v304 = vmul.f32 %v272, 2.0
  %v305 = vmul.f32 %v273, 2.0
  %v306 = vmul.f32 %v274, 2.0
  %v307 = vmul.f32 %v275, 2.0
  %v308 = vmul.f32 %v276, 2.0
  %v309 = vmul.f32 %v277, 2.0
  %v310 = vmul.f32 %v278, 2.0
  %v311 = vmul.f32 %v279, 2.0
  %v312 = vmul.f32 %v280, 2.0
  %v313 = vmul.f32 %v281, 2.0
  %v314 = vmul.f32 %v282, 2.0
  %v315 = vmul.f32 %v283, 2.0
  %v316 = vmul.f32 %v284, 2.0
  %v317 = vmul.f32 %v285, 2.0
  %v318 = vmul.f32 %v286, 2.0
  %v319 = vmul.f32 %v287, 2.0
  %v320 = vmul.f32 %v288, 2.0
  %v321 = vmul.f32 %v289, 2.0
  %v322 = vmul.f32 %v290, 2.0
  %v323 = vmul.f32 %v291, 2.0
  %v324 = vmul.f32 %v292, 2.0
  %v325 = vmul.f32 %v293, 2.0
  %v326 = vmul.f32 %v294, 2.0
  %v327 = vmul.f32 %v295, 2.0
  %v328 = vadd.f32 %v232, %v296
  %v329 = vadd.f32 %v233, %v297
  %v330 = vadd.f32 %v234, %v298
  %v331 = vadd.f32 %v235, %v299
  %v332 = vadd.f32 %v236, %v300
  %v333 = vadd.f32 %v237, %v301
  %v334 = vadd.f32 %v238, %v302
  %v335 = vadd.f32 %v239, %v303
  %v336 = vadd.f32 %v240, %v304
  %v337 = vadd.f32 %v241, %v305
  %v338 = vadd.f32 %v242, %v306
  %v339 = vadd.f32 %v243, %v307
  %v340 = vadd.f32 %v244, %v308
  %v341 = vadd.f32 %v245, %v309
  %v342 = vadd.f32 %v246, %v310
  %v343 = vadd.f32 %v247, %v311
  %v344 = vadd.f32 %v248, %v312
  %v345 = vadd.f32 %v249, %v313
  %v346 = vadd.f32 %v250, %v314
  %v347 = vadd.f32 %v251, %v315
  %v348 = vadd.f32 %v252, %v316
  %v349 = vadd.f32 %v253, %v317
  %v350 = vadd.f32 %v254, %v318
  %v351 = vadd.f32 %v255, %v319
  %v352 = vadd.f32 %v256, %v320
  %v353 = vadd.f32 %v257, %v321
  %v354 = vadd.f32 %v258, %v322
  %v355 = vadd.f32 %v259, %v323
  %v356 = vadd.f32 %v260, %v324
  %v357 = vadd.f32 %v261, %v325
  %v358 = vadd.f32 %v262, %v326
  %v359 = vadd.f32 %v263, %v327
  %v360 = vld [vmem:[#allocation2 + $0x2] sm:$0xff]
  %v361 = vld [vmem:[#allocation2 + $0xa] sm:$0xff]
  %v362 = vld [vmem:[#allocation2 + $0x1a] sm:$0xff]
  %v363 = vld [vmem:[#allocation2 + $0x22] sm:$0xff]
  %v364 = vld [vmem:[#allocation2 + $0x32] sm:$0xff]
  %v365 = vld [vmem:[#allocation2 + $0x3a] sm:$0xff]
  %v366 = vld [vmem:[#allocation2 + $0x4a] sm:$0xff]
  %v367 = vld [vmem:[#allocation2 + $0x52] sm:$0xff]
  %v368 = vld [vmem:[#allocation2 + $0x62] sm:$0xff]
  %v369 = vld [vmem:[#allocation2 + $0x6a] sm:$0xff]
  %v370 = vld [vmem:[#allocation2 + $0x7a] sm:$0xff]
  %v371 = vld [vmem:[#allocation2 + $0x82] sm:$0xff]
  %v372 = vld [vmem:[#allocation2 + $0x92] sm:$0xff]
  %v373 = vld [vmem:[#allocation2 + $0x9a] sm:$0xff]
  %v374 = vld [vmem:[#allocation2 + $0xaa] sm:$0xff]
  %v375 = vld [vmem:[#allocation2 + $0xb2] sm:$0xff]
  %v376 = vld [vmem:[#allocation2 + $0xc2] sm:$0xff]
  %v377 = vld [vmem:[#allocation2 + $0xca] sm:$0xff]
  %v378 = vld [vmem:[#allocation2 + $0xda] sm:$0xff]
  %v379 = vld [vmem:[#allocation2 + $0xe2] sm:$0xff]
  %v380 = vld [vmem:[#allocation2 + $0xf2] sm:$0xff]
  %v381 = vld [vmem:[#allocation2 + $0xfa] sm:$0xff]
  %v382 = vld [vmem:[#allocation2 + $0x10a] sm:$0xff]
  %v383 = vld [vmem:[#allocation2 + $0x112] sm:$0xff]
  %v384 = vld [vmem:[#allocation2 + $0x122] sm:$0xff]
  %v385 = vld [vmem:[#allocation2 + $0x12a] sm:$0xff]
  %v386 = vld [vmem:[#allocation2 + $0x13a] sm:$0xff]
  %v387 = vld [vmem:[#allocation2 + $0x142] sm:$0xff]
  %v388 = vld [vmem:[#allocation2 + $0x152] sm:$0xff]
  %v389 = vld [vmem:[#allocation2 + $0x15a] sm:$0xff]
  %v390 = vld [vmem:[#allocation2 + $0x16a] sm:$0xff]
  %v391 = vld [vmem:[#allocation2 + $0x172] sm:$0xff]
  %v392 = vadd.f32 %v328, %v360
  %v393 = vadd.f32 %v329, %v361
  %v394 = vadd.f32 %v330, %v362
  %v395 = vadd.f32 %v331, %v363
  %v396 = vadd.f32 %v332, %v364
  %v397 = vadd.f32 %v333, %v365
  %v398 = vadd.f32 %v334, %v366
  %v399 = vadd.f32 %v335, %v367
  %v400 = vadd.f32 %v336, %v368
  %v401 = vadd.f32 %v337, %v369
  %v402 = vadd.f32 %v338, %v370
  %v403 = vadd.f32 %v339, %v371
  %v404 = vadd.f32 %v340, %v372
  %v405 = vadd.f32 %v341, %v373
  %v406 = vadd.f32 %v342, %v374
  %v407 = vadd.f32 %v343, %v375
  %v408 = vadd.f32 %v344, %v376
  %v409 = vadd.f32 %v345, %v377
  %v410 = vadd.f32 %v346, %v378
  %v411 = vadd.f32 %v347, %v379
  %v412 = vadd.f32 %v348, %v380
  %v413 = vadd.f32 %v349, %v381
  %v414 = vadd.f32 %v350, %v382
  %v415 = vadd.f32 %v351, %v383
  %v416 = vadd.f32 %v352, %v384
  %v417 = vadd.f32 %v353, %v385
  %v418 = vadd.f32 %v354, %v386
  %v419 = vadd.f32 %v355, %v387
  %v420 = vadd.f32 %v356, %v388
  %v421 = vadd.f32 %v357, %v389
  %v422 = vadd.f32 %v358, %v390
  %v423 = vadd.f32 %v359, %v391
  %v424 = vmul.f32 %v392, 0.0625
  %v425 = vmul.f32 %v393, 0.0625
  %v426 = vmul.f32 %v394, 0.0625
  %v427 = vmul.f32 %v395, 0.0625
  %v428 = vmul.f32 %v396, 0.0625
  %v429 = vmul.f32 %v397, 0.0625
  %v430 = vmul.f32 %v398, 0.0625
  %v431 = vmul.f32 %v399, 0.0625
  %v432 = vmul.f32 %v400, 0.0625
  %v433 = vmul.f32 %v401, 0.0625
  %v434 = vmul.f32 %v402, 0.0625
  %v435 = vmul.f32 %v403, 0.0625
  %v436 = vmul.f32 %v404, 0.0625
  %v437 = vmul.f32 %v405, 0.0625
  %v438 = vmul.f32 %v406, 0.0625
  %v439 = vmul.f32 %v407, 0.0625
  %v440 = vmul.f32 %v408, 0.0625
  %v441 = vmul.f32 %v409, 0.0625
  %v442 = vmul.f32 %v410, 0.0625
  %v443 = vmul.f32 %v411, 0.0625
  %v444 = vmul.f32 %v412, 0.0625
  %v445 = vmul.f32 %v413, 0.0625
  %v446 = vmul.f32 %v414, 0.0625
  %v447 = vmul.f32 %v415, 0.0625
  %v448 = vmul.f32 %v416, 0.0625
  %v449 = vmul.f32 %v417, 0.0625
  %v450 = vmul.f32 %v418, 0.0625
  %v451 = vmul.f32 %v419, 0.0625
  %v452 = vmul.f32 %v420, 0.0625
  %v453 = vmul.f32 %v421, 0.0625
  %v454 = vmul.f32 %v422, 0.0625
  %v455 = vmul.f32 %v423, 0.0625
  %456 = vst.msk [vmem:[%s1] sm:$0xff] %vm125, %v424
  %457 = vst.msk [vmem:[%s1 + $0x8] sm:$0xff] %vm125, %v425
  %458 = vst.msk [vmem:[%s1 + $0x10] sm:$0xff] %vm125, %v426
  %459 = vst.msk [vmem:[%s1 + $0x18] sm:$0xff] %vm125, %v427
  %460 = vst.msk [vmem:[%s1 + $0x20] sm:$0xff] %vm125, %v428
  %461 = vst.msk [vmem:[%s1 + $0x28] sm:$0xff] %vm125, %v429
  %462 = vst.msk [vmem:[%s1 + $0x30] sm:$0xff] %vm125, %v430
  %463 = vst.msk [vmem:[%s1 + $0x38] sm:$0xff] %vm125, %v431
  %464 = vst.msk [vmem:[%s1 + $0x40] sm:$0xff] %vm125, %v432
  %465 = vst.msk [vmem:[%s1 + $0x48] sm:$0xff] %vm125, %v433
  %466 = vst.msk [vmem:[%s1 + $0x50] sm:$0xff] %vm125, %v434
  %467 = vst.msk [vmem:[%s1 + $0x58] sm:$0xff] %vm125, %v435
  %468 = vst.msk [vmem:[%s1 + $0x60] sm:$0xff] %vm125, %v436
  %469 = vst.msk [vmem:[%s1 + $0x68] sm:$0xff] %vm125, %v437
  %470 = vst.msk [vmem:[%s1 + $0x70] sm:$0xff] %vm125, %v438
  %471 = vst.msk [vmem:[%s1 + $0x78] sm:$0xff] %vm125, %v439
  %472 = vst.msk [vmem:[%s1 + $0x80] sm:$0xff] %vm125, %v440
  %473 = vst.msk [vmem:[%s1 + $0x88] sm:$0xff] %vm125, %v441
  %474 = vst.msk [vmem:[%s1 + $0x90] sm:$0xff] %vm125, %v442
  %475 = vst.msk [vmem:[%s1 + $0x98] sm:$0xff] %vm125, %v443
  %476 = vst.msk [vmem:[%s1 + $0xa0] sm:$0xff] %vm125, %v444
  %477 = vst.msk [vmem:[%s1 + $0xa8] sm:$0xff] %vm125, %v445
  %478 = vst.msk [vmem:[%s1 + $0xb0] sm:$0xff] %vm125, %v446
  %479 = vst.msk [vmem:[%s1 + $0xb8] sm:$0xff] %vm125, %v447
  %480 = vst.msk [vmem:[%s1 + $0xc0] sm:$0xff] %vm125, %v448
  %481 = vst.msk [vmem:[%s1 + $0xc8] sm:$0xff] %vm125, %v449
  %482 = vst.msk [vmem:[%s1 + $0xd0] sm:$0xff] %vm125, %v450
  %483 = vst.msk [vmem:[%s1 + $0xd8] sm:$0xff] %vm125, %v451
  %484 = vst.msk [vmem:[%s1 + $0xe0] sm:$0xff] %vm125, %v452
  %485 = vst.msk [vmem:[%s1 + $0xe8] sm:$0xff] %vm125, %v453
  %486 = vst.msk [vmem:[%s1 + $0xf0] sm:$0xff] %vm125, %v454
  %487 = vst.msk [vmem:[%s1 + $0xf8] sm:$0xff] %vm125, %v455
  // Predicated region
  $region6: #{tpu_custom_call.1} parent=0 // pred_check
    _
  $region7: #{tpu_custom_call.1} parent=0 // pred_check_branch
    %489 = sbr.rel (0) target = $region9
  $region8: #{tpu_custom_call.1} parent=0 // pred_region
    _
  $region9: #{tpu_custom_call.1} parent=0 // pred_fallthru
    _
  // Predicated region
  $region10: #{tpu_custom_call.1} parent=0 // pred_check
    _
  $region11: #{tpu_custom_call.1} parent=0 // pred_check_branch
    %491 = sbr.rel (0) target = $region13
  $region12: #{tpu_custom_call.1} parent=0 // pred_region
    _
  $region13: #{tpu_custom_call.1} parent=0 // pred_fallthru
    _

</llo_original>
